<compile_context>
chip_gen: v5e
topology: v5e:2x2
jax: 0.10.0
libtpu: 0.0.40
codegen_flags: <defaults>
</compile_context>

<pallas_src>
import jax
import jax.numpy as jnp
from jax import lax
from jax.experimental import pallas as pl
from jax.experimental.pallas import tpu as pltpu


def crd_head_kernel(x_ref, w1_ref, b1_ref, w2_ref, b2_ref, o_ref):
    x = x_ref[...]

    # fc1 + ReLU: MXU matmul with f32 accumulation; bias add / relu on the VPU.
    h = jnp.dot(x, w1_ref[...], preferred_element_type=jnp.float32)
    h = jnp.maximum(h + b1_ref[...].astype(jnp.float32), 0.0)

    # fc2: cast h back to the weight dtype so bf16 weights run at native MXU
    # rate; accumulation stays f32.
    y = jnp.dot(h.astype(w2_ref.dtype), w2_ref[...],
                preferred_element_type=jnp.float32)
    y = y + b2_ref[...].astype(jnp.float32)

    # L2 normalize along dim=1.  sqrt(max(ss, 1e-24)) == max(||y||, 1e-12),
    # matching torch F.normalize's eps, expressed as one EUP rsqrt + VPU mul.
    ss = jnp.sum(y * y, axis=1, keepdims=True)
    inv_norm = lax.rsqrt(jnp.maximum(ss, 1e-24))
    o_ref[...] = (y * inv_norm).astype(o_ref.dtype)


def _round_up(n, m):
    return ((n + m - 1) // m) * m


def _choose_batch_tile(B, cap):
    """Largest batch tile (multiple of 8, <= cap) that wastes little work.

    Preference order:
      1. an exact multiple-of-8 divisor of B (no jnp.pad copy at all),
      2. the largest tile whose padded tail is <= ~6% of the batch,
      3. minimal-padding fallback (8-row tile, <= 7 padded rows).
    """
    B8 = _round_up(B, 8)
    cap = max(8, (min(cap, B8) // 8) * 8)

    exact = 0
    for tb in range(cap, 7, -8):
        if B % tb == 0:
            exact = tb
            break
    if exact == cap or exact >= max(128, cap // 4):
        return exact

    for tb in range(cap, 7, -8):
        pad = _round_up(B, tb) - B
        if pad <= max(7, (B + pad) // 16):
            return tb if tb > exact else exact
    return max(exact, 8)


def crd_projection_head(x, w1, b1, w2, b2, *, batch_tile=None,
                        vmem_budget_bytes=40 << 20):
    """x: (B, D_in); w1: (D_in, H); b1: (1, H); w2: (H, D_out); b2: (1, D_out)."""
    B, D_in = x.shape
    H = w1.shape[1]
    D_out = w2.shape[1]
    itemsize = x.dtype.itemsize

    # Tile cap: larger tiles amortize per-step overhead on the bound HBM stream
    # (measured 63% -> 85%+ of roofline going 256 -> 512+ rows on v6e).
    cap = batch_tile if batch_tile is not None else (1024 if itemsize <= 2 else 512)

    # Force >= 2 grid steps when the batch allows it so the "parallel" batch
    # axis can occupy both TensorCores on v7x (no-op loop split on v5e/v6e).
    B8 = _round_up(B, 8)
    if B8 >= 16:
        cap = min(cap, max(8, ((B8 // 2) // 8) * 8))

    # Keep the kernel inside an explicit VMEM budget.  Conservative estimate:
    # double-buffered x/out blocks, double-buffered weights (even though we
    # request single buffering below), plus f32 intermediates h and y.
    w_bytes = (w1.size * w1.dtype.itemsize + b1.size * b1.dtype.itemsize
               + w2.size * w2.dtype.itemsize + b2.size * b2.dtype.itemsize)

    def est_bytes(tb):
        return (2 * tb * (D_in + D_out) * itemsize     # pipelined x / out blocks
                + 2 * w_bytes                          # worst-case weight buffers
                + 4 * tb * (H + D_out))                # f32 h / y intermediates

    while cap > 8 and est_bytes(cap) > vmem_budget_bytes:
        cap = max(8, ((cap // 2) // 8) * 8)

    TB = _choose_batch_tile(B, cap)

    B_pad = _round_up(B, TB)
    if B_pad != B:
        # TODO(synk): replace with an in-kernel ragged-last-tile mask (scalar-
        # prefetched row count + pl.when) to avoid this extra HBM pass entirely.
        x = jnp.pad(x, ((0, B_pad - B), (0, 0)))

    grid = (B_pad // TB,)

    bytes_accessed = (B_pad * (D_in + D_out) * itemsize + w_bytes)
    cost = pl.CostEstimate(
        flops=2 * B_pad * (D_in * H + H * D_out),
        transcendentals=B_pad,            # one rsqrt per row
        bytes_accessed=bytes_accessed,
    )

    # Constant-index weight/bias blocks: DMA'd once, single VMEM buffer.
    def const_spec(shape):
        return pl.BlockSpec(shape, lambda i: (0, 0), pipeline_mode=pl.Buffered(1))

    vmem_limit = int(min(max(1.25 * est_bytes(TB) + (2 << 20), 32 << 20), 56 << 20))

    out = pl.pallas_call(
        crd_head_kernel,
        out_shape=jax.ShapeDtypeStruct((B_pad, D_out), x.dtype),
        grid_spec=pltpu.PrefetchScalarGridSpec(
            num_scalar_prefetch=0,
            grid=grid,
            in_specs=[
                # Activations: tiled along the batch grid axis (double-buffered).
                pl.BlockSpec((TB, D_in), lambda i: (i, 0)),
                const_spec((D_in, H)),
                const_spec((1, H)),
                const_spec((H, D_out)),
                const_spec((1, D_out)),
            ],
            out_specs=pl.BlockSpec((TB, D_out), lambda i: (i, 0)),
        ),
        compiler_params=pltpu.CompilerParams(
            # Batch tiles are independent -> shard across TCs on v7x.
            dimension_semantics=("parallel",),
            vmem_limit_bytes=vmem_limit,
        ),
        cost_estimate=cost,
    )(x, w1, b1, w2, b2)

    return out[:B] if B_pad != B else out


def reference(x, w1, b1, w2, b2):
    h = jnp.maximum(x @ w1 + b1, 0.0)
    y = h @ w2 + b2
    n = jnp.maximum(jnp.linalg.norm(y, axis=1, keepdims=True), 1e-12)
    return y / n


if __name__ == "__main__":
    # Module config: input_dim=256, output_dim=128 -> hidden = max(128, 256//2) = 128
    B, D_in, D_out = 32, 256, 128
    H = max(D_out, D_in // 2)

    key = jax.random.PRNGKey(0)
    kx, kw1, kb1, kw2, kb2 = jax.random.split(key, 5)

    x = jax.random.normal(kx, (B, D_in), dtype=jnp.float32)
    # Deterministic synthetic params (kaiming-ish scale), stored as (in, out).
    w1 = jax.random.normal(kw1, (D_in, H), dtype=jnp.float32) * (1.0 / D_in) ** 0.5
    b1 = jax.random.normal(kb1, (1, H), dtype=jnp.float32) * 0.01
    w2 = jax.random.normal(kw2, (H, D_out), dtype=jnp.float32) * (1.0 / H) ** 0.5
    b2 = jax.random.normal(kb2, (1, D_out), dtype=jnp.float32) * 0.01

    ref = reference(x, w1, b1, w2, b2)

    # f32 path; small batch_tile so the batch grid/pipeline is exercised (>1 step).
    out = jax.block_until_ready(crd_projection_head(x, w1, b1, w2, b2, batch_tile=16))
    assert out.shape == (B, D_out)
    err = float(jnp.max(jnp.abs(out - ref)))
    assert jnp.allclose(out, ref, atol=1e-4, rtol=1e-4), err

    # bf16 data path (halves bytes on the bound HBM stream, native MXU rate);
    # f32 accumulation inside the kernel, explicit looser tolerance vs f32 ref.
    bf = jnp.bfloat16
    out_bf16 = jax.block_until_ready(
        crd_projection_head(x.astype(bf), w1.astype(bf), b1.astype(bf),
                            w2.astype(bf), b2.astype(bf)))
    assert out_bf16.shape == (B, D_out)
    err_bf16 = float(jnp.max(jnp.abs(out_bf16.astype(jnp.float32) - ref)))
    assert err_bf16 < 3e-2, err_bf16

    print("KERNEL_OK")
</pallas_src>

<mosaic_0001>
module attributes {stable_mosaic.version = 11 : i64} {
  func.func @crd_head_kernel(%arg0: i32, %arg1: memref<16x256xf32, #tpu.memory_space<vmem>>, %arg2: memref<256x128xf32, #tpu.memory_space<vmem>>, %arg3: memref<1x128xf32, #tpu.memory_space<vmem>>, %arg4: memref<128x128xf32, #tpu.memory_space<vmem>>, %arg5: memref<1x128xf32, #tpu.memory_space<vmem>>, %arg6: memref<16x128xf32, #tpu.memory_space<vmem>>) attributes {dimension_semantics = [#tpu.dimension_semantics<parallel>], iteration_bounds = array<i64: 2>, scalar_prefetch = 0 : i64, scratch_operands = 0 : i64, tpu.core_type = #tpu.core_type<tc>, window_params = [{transform_indices = @transform_0, window_bounds = array<i64: 16, 256>}, {pipeline_mode = #tpu.pipeline_mode<synchronous>, transform_indices = @transform_1, window_bounds = array<i64: 256, 128>}, {pipeline_mode = #tpu.pipeline_mode<synchronous>, transform_indices = @transform_2, window_bounds = array<i64: 1, 128>}, {pipeline_mode = #tpu.pipeline_mode<synchronous>, transform_indices = @transform_3, window_bounds = array<i64: 128, 128>}, {pipeline_mode = #tpu.pipeline_mode<synchronous>, transform_indices = @transform_4, window_bounds = array<i64: 1, 128>}, {transform_indices = @transform_5, window_bounds = array<i64: 16, 128>}]} {
    %c0 = arith.constant 0 : index
    %c0_0 = arith.constant 0 : index
    %0 = vector.load %arg1[%c0, %c0_0] : memref<16x256xf32, #tpu.memory_space<vmem>>, vector<16x256xf32>
    %c0_1 = arith.constant 0 : index
    %c0_2 = arith.constant 0 : index
    %1 = vector.load %arg2[%c0_1, %c0_2] : memref<256x128xf32, #tpu.memory_space<vmem>>, vector<256x128xf32>
    %cst = arith.constant dense<0.000000e+00> : vector<16x128xf32>
    %2 = tpu.matmul %0, %1, %cst {dimension_numbers = #tpu.dot_dimension_numbers<[1], [0], [0], [1], [0, 0, 1, 1], [], []>} : vector<16x256xf32>, vector<256x128xf32>, vector<16x128xf32> -> vector<16x128xf32>
    %c0_3 = arith.constant 0 : index
    %c0_4 = arith.constant 0 : index
    %3 = vector.load %arg3[%c0_3, %c0_4] : memref<1x128xf32, #tpu.memory_space<vmem>>, vector<1x128xf32>
    %4 = vector.broadcast %3 : vector<1x128xf32> to vector<16x128xf32>
    %5 = arith.addf %2, %4 : vector<16x128xf32>
    %cst_5 = arith.constant 0.000000e+00 : f32
    %6 = vector.broadcast %cst_5 : f32 to vector<16x128xf32>
    %7 = arith.maximumf %5, %6 : vector<16x128xf32>
    %c0_6 = arith.constant 0 : index
    %c0_7 = arith.constant 0 : index
    %8 = vector.load %arg4[%c0_6, %c0_7] : memref<128x128xf32, #tpu.memory_space<vmem>>, vector<128x128xf32>
    %cst_8 = arith.constant dense<0.000000e+00> : vector<16x128xf32>
    %9 = tpu.matmul %7, %8, %cst_8 {dimension_numbers = #tpu.dot_dimension_numbers<[1], [0], [0], [1], [0, 0, 1, 1], [], []>} : vector<16x128xf32>, vector<128x128xf32>, vector<16x128xf32> -> vector<16x128xf32>
    %c0_9 = arith.constant 0 : index
    %c0_10 = arith.constant 0 : index
    %10 = vector.load %arg5[%c0_9, %c0_10] : memref<1x128xf32, #tpu.memory_space<vmem>>, vector<1x128xf32>
    %11 = vector.broadcast %10 : vector<1x128xf32> to vector<16x128xf32>
    %12 = arith.addf %9, %11 : vector<16x128xf32>
    %13 = arith.mulf %12, %12 : vector<16x128xf32>
    %cst_11 = arith.constant dense<0.000000e+00> : vector<16xf32>
    %14 = vector.multi_reduction <add>, %13, %cst_11 [1] : vector<16x128xf32> to vector<16xf32>
    %15 = vector.shape_cast %14 : vector<16xf32> to vector<16x1xf32>
    %cst_12 = arith.constant 1.000000e-24 : f32
    %16 = vector.broadcast %cst_12 : f32 to vector<16x1xf32>
    %17 = arith.maximumf %15, %16 : vector<16x1xf32>
    %18 = math.rsqrt %17 : vector<16x1xf32>
    %19 = vector.broadcast %18 : vector<16x1xf32> to vector<16x128xf32>
    %20 = arith.mulf %12, %19 : vector<16x128xf32>
    %c0_13 = arith.constant 0 : index
    %c0_14 = arith.constant 0 : index
    %21 = vector.load %arg6[%c0_13, %c0_14] : memref<16x128xf32, #tpu.memory_space<vmem>>, vector<16x128xf32>
    tpu.vector_store %arg6[%c0_13, %c0_14], %20 {strides = array<i32>} : memref<16x128xf32, #tpu.memory_space<vmem>>, vector<16x128xf32>,
    return
  }
  func.func @transform_0(%arg0: i32) -> (i32, i32) {
    %c0_i32 = arith.constant 0 : i32
    %c0_i32_0 = arith.constant 0 : i32
    return %arg0, %c0_i32 : i32, i32
  }
  func.func @transform_1(%arg0: i32) -> (i32, i32) {
    %c0_i32 = arith.constant 0 : i32
    %c0_i32_0 = arith.constant 0 : i32
    %c0_i32_1 = arith.constant 0 : i32
    return %c0_i32, %c0_i32_0 : i32, i32
  }
  func.func @transform_2(%arg0: i32) -> (i32, i32) {
    %c0_i32 = arith.constant 0 : i32
    %c0_i32_0 = arith.constant 0 : i32
    %c0_i32_1 = arith.constant 0 : i32
    return %c0_i32, %c0_i32_0 : i32, i32
  }
  func.func @transform_3(%arg0: i32) -> (i32, i32) {
    %c0_i32 = arith.constant 0 : i32
    %c0_i32_0 = arith.constant 0 : i32
    %c0_i32_1 = arith.constant 0 : i32
    return %c0_i32, %c0_i32_0 : i32, i32
  }
  func.func @transform_4(%arg0: i32) -> (i32, i32) {
    %c0_i32 = arith.constant 0 : i32
    %c0_i32_0 = arith.constant 0 : i32
    %c0_i32_1 = arith.constant 0 : i32
    return %c0_i32, %c0_i32_0 : i32, i32
  }
  func.func @transform_5(%arg0: i32) -> (i32, i32) {
    %c0_i32 = arith.constant 0 : i32
    %c0_i32_0 = arith.constant 0 : i32
    return %arg0, %c0_i32 : i32, i32
  }
}

</mosaic_0001>

<llo_original>
// kernel: tpu_custom_call.1
$region0: #{tpu_custom_call.1}
  #allocation0 [shape = 'u32[]', space=smem, size = 0x4, offset = 0x4, fixed_abs, tag = 'smem constant byte address 0x4 - core index']
  #allocation1 [shape = 'u32[72,128]{1,0:T(1,128)}', space=vmem, size = 0x9000, scoped, tag = 'internal scratch']
  %s0 = inlined_call_operand.hbm [shape: f32[32,256], index: 0, kind: input, shape index: {}]
  %s1 = inlined_call_operand.hbm [shape: f32[256,128], index: 1, kind: input, shape index: {}]
  %s2 = inlined_call_operand.vmem [shape: f32[1,128], index: 2, kind: input, shape index: {}]
  %s3 = inlined_call_operand.hbm [shape: f32[128,128], index: 3, kind: input, shape index: {}]
  %s4 = inlined_call_operand.vmem [shape: f32[1,128], index: 4, kind: input, shape index: {}]
  %s5 = inlined_call_operand.hbm [shape: f32[32,128], index: 5, kind: output, shape index: {}]
  %s6 = sld [smem:[#allocation0]]
  $region65: #{tpu_custom_call.1} parent=0
    _
  %s8 = ssub.s32 1, %s6
  %s9 = scalar_select 0, %s8, %s6
  $region1: #{tpu_custom_call.1} parent=0
    #allocation2 [shape = 'u8[32768]{0}', space=vmem, size = 0x8000, scoped, tag = 'input window, operand 0']
    #allocation3 [shape = 's32[2]{0}', space=sflag, size = 0x8, scoped, tag = 'scoped memory for tpu_custom_call.1']
    #allocation4 [shape = 's32[2]{0}', space=sflag, size = 0x8, scoped, tag = 'scoped memory for tpu_custom_call.1']
    #allocation5 [shape = 'u8[131072]{0}', space=vmem, size = 0x20000, scoped, tag = 'input window, operand 1, single buffered']
    #allocation6 [shape = 's32[1]{0}', space=sflag, size = 0x4, scoped, tag = 'scoped memory for tpu_custom_call.1']
    #allocation7 [shape = 'u8[65536]{0}', space=vmem, size = 0x10000, scoped, tag = 'input window, operand 3, single buffered']
    #allocation8 [shape = 'u8[16384]{0}', space=vmem, size = 0x4000, scoped, tag = 'output window, operand 0']
    %10 = vsyncpa [#allocation3], 0
    %s11 = scalar_lea.sflag [#allocation3], 1
    %12 = vsyncpa %s11, 0
    %13 = vsyncpa [#allocation6], 0
    %14 = vsyncpa [#allocation4], 0
    %s15 = scalar_lea.sflag [#allocation4], 1
    %16 = vsyncpa %s15, 0
    loop: start=0, step=1, limit=4
    $region2: #{tpu_custom_call.1} parent=1 // loop_pre_header
      _
    $region3: #{tpu_custom_call.1} parent=1 // loop_header
      %s18 = sphi 0, %s22
      %p19 = scmp.ge.s32.totalorder %s18, 4
      %s28 = sphi 0, %s30
      %s31 = sphi 0, %s28
      %s32 = sphi 0, %s31
      %s48 = sphi 0, %s32
      %s52 = sphi 0, %s52
      %s54 = sphi 0, %s52
      %s55 = sphi 0, %s54
      %s69 = sphi 0, %s55
      %s73 = sphi 0, %s73
      %s75 = sphi 0, %s73
      %s76 = sphi 0, %s75
      %s90 = sphi 0, %s76
      %s94 = sphi 0, %s94
      %s96 = sphi 0, %s94
      %s97 = sphi 0, %s96
      %s111 = sphi 0, %s97
      %s115 = sphi 0, %s115
      %s117 = sphi 0, %s115
      %s118 = sphi 0, %s117
      %s132 = sphi 0, %s118
      %s138 = sphi 0, %s140
      %s141 = sphi 0, %s138
      %s142 = sphi 0, %s141
      %s158 = sphi 0, %s142
    $region4: #{tpu_custom_call.1} parent=1 // loop_header_branch
      %21 = sbr.rel (%p19) target = $region8
    $region5: #{tpu_custom_call.1} parent=1 // loop_body
      %s23 = ssub.s32 %s18, 1
      %s24 = ssub.s32 %s18, 2
      %s25 = sadd.s32 %s18, 1
      %s26 = ssub.s32 %s18, %s25
      %p27 = scmp.eq.s32.totalorder %s26, 0
      %s29 = sadd.s32 %s28, 1
      %s30 = scalar_select %p27, %s28, %s29
      %p33 = pneg %p27
      %p34 = scmp.eq.s32.totalorder %s18, 1
      %p35 = por %p33, %p34
      %p36 = scmp.ne.s32.totalorder %s28, %s31
      %p37 = scmp.eq.s32.totalorder %s18, 0
      %p38 = por %p36, %p37
      %p39 = scmp.ne.s32.totalorder %s28, %s31
      %p40 = scmp.eq.s32.totalorder %s23, 1
      %p41 = por %p39, %p40
      %p42 = scmp.ne.s32.totalorder %s31, %s32
      %p43 = scmp.eq.s32.totalorder %s23, 0
      %p44 = por %p42, %p43
      %p45 = scmp.ne.s32.totalorder %s31, %s32
      %p46 = scmp.eq.s32.totalorder %s24, 1
      %p47 = por %p45, %p46
      %p49 = scmp.ne.s32.totalorder %s32, %s48
      %p50 = scmp.eq.s32.totalorder %s24, 0
      %p51 = por %p49, %p50
      %s53 = sadd.s32 %s52, 1
      %p56 = scmp.eq.s32.totalorder %s18, 1
      %p57 = scmp.ne.s32.totalorder %s52, %s54
      %p58 = scmp.eq.s32.totalorder %s18, 0
      %p59 = por %p57, %p58
      %p60 = scmp.ne.s32.totalorder %s52, %s54
      %p61 = scmp.eq.s32.totalorder %s23, 1
      %p62 = por %p60, %p61
      %p63 = scmp.ne.s32.totalorder %s54, %s55
      %p64 = scmp.eq.s32.totalorder %s23, 0
      %p65 = por %p63, %p64
      %p66 = scmp.ne.s32.totalorder %s54, %s55
      %p67 = scmp.eq.s32.totalorder %s24, 1
      %p68 = por %p66, %p67
      %p70 = scmp.ne.s32.totalorder %s55, %s69
      %p71 = scmp.eq.s32.totalorder %s24, 0
      %p72 = por %p70, %p71
      %s74 = sadd.s32 %s73, 1
      %p77 = scmp.eq.s32.totalorder %s18, 1
      %p78 = scmp.ne.s32.totalorder %s73, %s75
      %p79 = scmp.eq.s32.totalorder %s18, 0
      %p80 = por %p78, %p79
      %p81 = scmp.ne.s32.totalorder %s73, %s75
      %p82 = scmp.eq.s32.totalorder %s23, 1
      %p83 = por %p81, %p82
      %p84 = scmp.ne.s32.totalorder %s75, %s76
      %p85 = scmp.eq.s32.totalorder %s23, 0
      %p86 = por %p84, %p85
      %p87 = scmp.ne.s32.totalorder %s75, %s76
      %p88 = scmp.eq.s32.totalorder %s24, 1
      %p89 = por %p87, %p88
      %p91 = scmp.ne.s32.totalorder %s76, %s90
      %p92 = scmp.eq.s32.totalorder %s24, 0
      %p93 = por %p91, %p92
      %s95 = sadd.s32 %s94, 1
      %p98 = scmp.eq.s32.totalorder %s18, 1
      %p99 = scmp.ne.s32.totalorder %s94, %s96
      %p100 = scmp.eq.s32.totalorder %s18, 0
      %p101 = por %p99, %p100
      %p102 = scmp.ne.s32.totalorder %s94, %s96
      %p103 = scmp.eq.s32.totalorder %s23, 1
      %p104 = por %p102, %p103
      %p105 = scmp.ne.s32.totalorder %s96, %s97
      %p106 = scmp.eq.s32.totalorder %s23, 0
      %p107 = por %p105, %p106
      %p108 = scmp.ne.s32.totalorder %s96, %s97
      %p109 = scmp.eq.s32.totalorder %s24, 1
      %p110 = por %p108, %p109
      %p112 = scmp.ne.s32.totalorder %s97, %s111
      %p113 = scmp.eq.s32.totalorder %s24, 0
      %p114 = por %p112, %p113
      %s116 = sadd.s32 %s115, 1
      %p119 = scmp.eq.s32.totalorder %s18, 1
      %p120 = scmp.ne.s32.totalorder %s115, %s117
      %p121 = scmp.eq.s32.totalorder %s18, 0
      %p122 = por %p120, %p121
      %p123 = scmp.ne.s32.totalorder %s115, %s117
      %p124 = scmp.eq.s32.totalorder %s23, 1
      %p125 = por %p123, %p124
      %p126 = scmp.ne.s32.totalorder %s117, %s118
      %p127 = scmp.eq.s32.totalorder %s23, 0
      %p128 = por %p126, %p127
      %p129 = scmp.ne.s32.totalorder %s117, %s118
      %p130 = scmp.eq.s32.totalorder %s24, 1
      %p131 = por %p129, %p130
      %p133 = scmp.ne.s32.totalorder %s118, %s132
      %p134 = scmp.eq.s32.totalorder %s24, 0
      %p135 = por %p133, %p134
      %s136 = ssub.s32 %s18, %s25
      %p137 = scmp.eq.s32.totalorder %s136, 0
      %s139 = sadd.s32 %s138, 1
      %s140 = scalar_select %p137, %s138, %s139
      %p143 = pneg %p137
      %p144 = scmp.eq.s32.totalorder %s18, 1
      %p145 = por %p143, %p144
      %p146 = scmp.ne.s32.totalorder %s138, %s141
      %p147 = scmp.eq.s32.totalorder %s18, 0
      %p148 = por %p146, %p147
      %p149 = scmp.ne.s32.totalorder %s138, %s141
      %p150 = scmp.eq.s32.totalorder %s23, 1
      %p151 = por %p149, %p150
      %p152 = scmp.ne.s32.totalorder %s141, %s142
      %p153 = scmp.eq.s32.totalorder %s23, 0
      %p154 = por %p152, %p153
      %p155 = scmp.ne.s32.totalorder %s141, %s142
      %p156 = scmp.eq.s32.totalorder %s24, 1
      %p157 = por %p155, %p156
      %p159 = scmp.ne.s32.totalorder %s142, %s158
      %p160 = scmp.eq.s32.totalorder %s24, 0
      %p161 = por %p159, %p160
      %p162 = scmp.le.s32.totalorder 1, %s18
      %p163 = scmp.lt.s32.totalorder %s18, 3
      %p164 = pnand %p162, %p163
      %p165 = pneg %p164
      // Predicated region
      $region9: #{tpu_custom_call.1} parent=5 // pred_check
        _
      $region10: #{tpu_custom_call.1} parent=5 // pred_check_branch
        %167 = sbr.rel (%p164) target = $region12
      $region11: #{tpu_custom_call.1} parent=5 // pred_region
        %s168 = ssub.s32 %s18, 1
        // Predicated region
        $region13: #{tpu_custom_call.1} parent=11 // pred_check
          %p169 = pneg %p65
        $region14: #{tpu_custom_call.1} parent=11 // pred_check_branch
          %171 = sbr.rel (%p169) target = $region16
        $region15: #{tpu_custom_call.1} parent=11 // pred_region
          %173 = vsyncadd [#allocation6], 0
          %s174 = sshll.u32 %s1, 4
          %s175 = int_to_ptr.hbm [resolvable:$true] %s174
          %s176 = sshll.u32 [#allocation5], 4
          %s177 = int_to_ptr.vmem [resolvable:$true] %s176
          %182 = dma.hbm_to_vmem [thread:$0]  %s175, 4096, %s177, [#allocation6], 128, 128, 8
        $region16: #{tpu_custom_call.1} parent=11 // pred_fallthru
          _
        // Predicated region
        $region17: #{tpu_custom_call.1} parent=11 // pred_check
          %p183 = pneg %p86
        $region18: #{tpu_custom_call.1} parent=11 // pred_check_branch
          %185 = sbr.rel (%p183) target = $region20
        $region19: #{tpu_custom_call.1} parent=11 // pred_region
          _
        $region20: #{tpu_custom_call.1} parent=11 // pred_fallthru
          _
        // Predicated region
        $region21: #{tpu_custom_call.1} parent=11 // pred_check
          %p186 = pneg %p107
        $region22: #{tpu_custom_call.1} parent=11 // pred_check_branch
          %188 = sbr.rel (%p186) target = $region24
        $region23: #{tpu_custom_call.1} parent=11 // pred_region
          %190 = vsyncadd [#allocation6], 0
          %s191 = sshll.u32 %s3, 4
          %s192 = int_to_ptr.hbm [resolvable:$true] %s191
          %s193 = sshll.u32 [#allocation7], 4
          %s194 = int_to_ptr.vmem [resolvable:$true] %s193
          %199 = dma.hbm_to_vmem [thread:$0]  %s192, 2048, %s194, [#allocation6], 128, 128, 8
        $region24: #{tpu_custom_call.1} parent=11 // pred_fallthru
          _
        // Predicated region
        $region25: #{tpu_custom_call.1} parent=11 // pred_check
          %p200 = pneg %p128
        $region26: #{tpu_custom_call.1} parent=11 // pred_check_branch
          %202 = sbr.rel (%p200) target = $region28
        $region27: #{tpu_custom_call.1} parent=11 // pred_region
          _
        $region28: #{tpu_custom_call.1} parent=11 // pred_fallthru
          _
      $region12: #{tpu_custom_call.1} parent=5 // pred_fallthru
        _
      %p203 = scmp.lt.s32.totalorder %s18, 2
      // Predicated region
      $region29: #{tpu_custom_call.1} parent=5 // pred_check
        %p204 = pneg %p203
      $region30: #{tpu_custom_call.1} parent=5 // pred_check_branch
        %206 = sbr.rel (%p204) target = $region32
      $region31: #{tpu_custom_call.1} parent=5 // pred_region
        // Predicated region
        $region33: #{tpu_custom_call.1} parent=31 // pred_check
          %p207 = pneg %p38
        $region34: #{tpu_custom_call.1} parent=31 // pred_check_branch
          %209 = sbr.rel (%p207) target = $region36
        $region35: #{tpu_custom_call.1} parent=31 // pred_region
          %s210 = sand.u32 %s28, 1
          %s211 = scalar_lea.sflag [#allocation3], %s210
          %s212 = sand.u32 %s28, 1
          %s213 = smul.addr %s212, 32
          %s214 = scalar_lea.vmem [#allocation2], %s213
          %s215 = smul.u32 2, %s18
          %217 = vsyncadd %s211, 0
          %s218 = smul.addr %s215, 2
          %s219 = smul.addr %s218, 8
          %s220 = scalar_lea.hbm %s0, %s219
          %s221 = sshll.u32 %s220, 4
          %s222 = int_to_ptr.hbm [resolvable:$true] %s221
          %s223 = sshll.u32 %s214, 4
          %s224 = int_to_ptr.vmem [resolvable:$true] %s223
          %229 = dma.hbm_to_vmem [thread:$0]  %s222, 512, %s224, %s211, 256, 256, 16
        $region36: #{tpu_custom_call.1} parent=31 // pred_fallthru
          _
      $region32: #{tpu_custom_call.1} parent=5 // pred_fallthru
        _
      %p230 = scmp.le.s32.totalorder 1, %s18
      %p231 = scmp.lt.s32.totalorder %s18, 3
      %p232 = pnand %p230, %p231
      %p233 = pneg %p232
      // Predicated region
      $region37: #{tpu_custom_call.1} parent=5 // pred_check
        _
      $region38: #{tpu_custom_call.1} parent=5 // pred_check_branch
        %235 = sbr.rel (%p232) target = $region40
      $region39: #{tpu_custom_call.1} parent=5 // pred_region
        %s236 = ssub.s32 %s18, 1
        %s237 = sand.u32 %s31, 1
        %s238 = scalar_lea.sflag [#allocation3], %s237
        %s239 = sand.u32 %s31, 1
        %s240 = smul.addr %s239, 32
        %s241 = scalar_lea.vmem [#allocation2], %s240
        // Predicated region
        $region41: #{tpu_custom_call.1} parent=39 // pred_check
          %p242 = pneg %p44
        $region42: #{tpu_custom_call.1} parent=39 // pred_check_branch
          %244 = sbr.rel (%p242) target = $region44
        $region43: #{tpu_custom_call.1} parent=39 // pred_region
          %246 = dma.done %s238, 512
        $region44: #{tpu_custom_call.1} parent=39 // pred_fallthru
          _
        // Predicated region
        $region45: #{tpu_custom_call.1} parent=39 // pred_check
          %p247 = pneg %p65
        $region46: #{tpu_custom_call.1} parent=39 // pred_check_branch
          %249 = sbr.rel (%p247) target = $region48
        $region47: #{tpu_custom_call.1} parent=39 // pred_region
          %251 = dma.done [#allocation6], 4096
        $region48: #{tpu_custom_call.1} parent=39 // pred_fallthru
          _
        // Predicated region
        $region49: #{tpu_custom_call.1} parent=39 // pred_check
          %p252 = pneg %p107
        $region50: #{tpu_custom_call.1} parent=39 // pred_check_branch
          %254 = sbr.rel (%p252) target = $region52
        $region51: #{tpu_custom_call.1} parent=39 // pred_region
          %256 = dma.done [#allocation6], 2048
        $region52: #{tpu_custom_call.1} parent=39 // pred_fallthru
          _
        %s257 = sand.u32 %s31, 1
        %s258 = scalar_lea.sflag [#allocation3], %s257
        %s259 = sand.u32 %s31, 1
        %s260 = smul.addr %s259, 32
        %s261 = scalar_lea.vmem [#allocation2], %s260
        %p262 = pneg %p44
        %p263 = pneg %p41
        %p264 = pneg %p65
        %p265 = pneg %p62
        %p266 = pneg %p86
        %p267 = pneg %p83
        %p268 = pneg %p107
        %p269 = pneg %p104
        %p270 = pneg %p128
        %p271 = pneg %p125
        %p272 = pneg %p154
        %p273 = pneg %p151
        %s274 = sand.u32 %s141, 1
        %s275 = scalar_lea.sflag [#allocation4], %s274
        %s276 = sand.u32 %s141, 1
        %s277 = smul.addr %s276, 16
        %s278 = scalar_lea.vmem [#allocation8], %s277
        %s279 = smul.u32 2, %s23
        %s280 = smul.u32 2, %s23
        %v281 = vld [vmem:[%s241] sm:$0xff]
        %v282 = vld [vmem:[%s241 + $0x8] sm:$0xff]
        %v283 = vld [vmem:[%s241 + $0x10] sm:$0xff]
        %v284 = vld [vmem:[%s241 + $0x18] sm:$0xff]
        %v285 = vld [vmem:[#allocation5] sm:$0xff]
        %v286 = vld [vmem:[#allocation5 + $0x8] sm:$0xff]
        %v287 = vld [vmem:[#allocation5 + $0x10] sm:$0xff]
        %v288 = vld [vmem:[#allocation5 + $0x18] sm:$0xff]
        %v289 = vld [vmem:[#allocation5 + $0x20] sm:$0xff]
        %v290 = vld [vmem:[#allocation5 + $0x28] sm:$0xff]
        %v291 = vld [vmem:[#allocation5 + $0x30] sm:$0xff]
        %v292 = vld [vmem:[#allocation5 + $0x38] sm:$0xff]
        %v293 = vld [vmem:[#allocation5 + $0x40] sm:$0xff]
        %v294 = vld [vmem:[#allocation5 + $0x48] sm:$0xff]
        %v295 = vld [vmem:[#allocation5 + $0x50] sm:$0xff]
        %v296 = vld [vmem:[#allocation5 + $0x58] sm:$0xff]
        %v297 = vld [vmem:[#allocation5 + $0x60] sm:$0xff]
        %v298 = vld [vmem:[#allocation5 + $0x68] sm:$0xff]
        %v299 = vld [vmem:[#allocation5 + $0x70] sm:$0xff]
        %v300 = vld [vmem:[#allocation5 + $0x78] sm:$0xff]
        %v301 = vld [vmem:[#allocation5 + $0x80] sm:$0xff]
        %v302 = vld [vmem:[#allocation5 + $0x88] sm:$0xff]
        %v303 = vld [vmem:[#allocation5 + $0x90] sm:$0xff]
        %v304 = vld [vmem:[#allocation5 + $0x98] sm:$0xff]
        %v305 = vld [vmem:[#allocation5 + $0xa0] sm:$0xff]
        %v306 = vld [vmem:[#allocation5 + $0xa8] sm:$0xff]
        %v307 = vld [vmem:[#allocation5 + $0xb0] sm:$0xff]
        %v308 = vld [vmem:[#allocation5 + $0xb8] sm:$0xff]
        %v309 = vld [vmem:[#allocation5 + $0xc0] sm:$0xff]
        %v310 = vld [vmem:[#allocation5 + $0xc8] sm:$0xff]
        %v311 = vld [vmem:[#allocation5 + $0xd0] sm:$0xff]
        %v312 = vld [vmem:[#allocation5 + $0xd8] sm:$0xff]
        %v313 = vld [vmem:[#allocation5 + $0xe0] sm:$0xff]
        %v314 = vld [vmem:[#allocation5 + $0xe8] sm:$0xff]
        %v315 = vld [vmem:[#allocation5 + $0xf0] sm:$0xff]
        %v316 = vld [vmem:[#allocation5 + $0xf8] sm:$0xff]
        %v317 = vld [vmem:[%s2] sm:$0x1]
        %v319 = vperm.slane %v317, 0
        %321 = vmatpush.msra.mxu0 %v300
        %322 = vmatpush.msra.mxu0 %v299
        %323 = vmatpush.msra.mxu0 %v298
        %324 = vmatpush.msra.mxu0 %v297
        %325 = vmatpush.msra.mxu0 %v296
        %326 = vmatpush.msra.mxu0 %v295
        %327 = vmatpush.msra.mxu0 %v294
        %328 = vmatpush.msra.mxu0 %v293
        %329 = vmatpush.msra.mxu0 %v292
        %330 = vmatpush.msra.mxu0 %v291
        %331 = vmatpush.msra.mxu0 %v290
        %332 = vmatpush.msra.mxu0 %v289
        %333 = vmatpush.msra.mxu0 %v288
        %334 = vmatpush.msra.mxu0 %v287
        %335 = vmatpush.msra.mxu0 %v286
        %336 = vmatpush.msra.mxu0 %v285
        %337 = vmatmul.f32.gmra.mxu0 %v281
        %v338 = vpop.f32.mrf.mxu0
        %v339 = vadd.f32 %v319, %v338
        %340 = vmatmul.f32.gmra.mxu0 %v283
        %v341 = vpop.f32.mrf.mxu0
        %v342 = vadd.f32 %v319, %v341
        %343 = vdwg.mxu0
        %344 = vmatpush.msra.mxu0 %v316
        %345 = vmatpush.msra.mxu0 %v315
        %346 = vmatpush.msra.mxu0 %v314
        %347 = vmatpush.msra.mxu0 %v313
        %348 = vmatpush.msra.mxu0 %v312
        %349 = vmatpush.msra.mxu0 %v311
        %350 = vmatpush.msra.mxu0 %v310
        %351 = vmatpush.msra.mxu0 %v309
        %352 = vmatpush.msra.mxu0 %v308
        %353 = vmatpush.msra.mxu0 %v307
        %354 = vmatpush.msra.mxu0 %v306
        %355 = vmatpush.msra.mxu0 %v305
        %356 = vmatpush.msra.mxu0 %v304
        %357 = vmatpush.msra.mxu0 %v303
        %358 = vmatpush.msra.mxu0 %v302
        %359 = vmatpush.msra.mxu0 %v301
        %360 = vmatmul.f32.gmra.mxu0 %v282
        %v361 = vpop.f32.mrf.mxu0
        %v362 = vadd.f32 %v339, %v361
        %363 = vmatmul.f32.gmra.mxu0 %v284
        %v364 = vpop.f32.mrf.mxu0
        %v365 = vadd.f32 %v342, %v364
        %366 = vdwg.mxu0
        %v367 = vmax.f32 %v362, 0.0
        %v368 = vmax.f32 %v365, 0.0
        %v369 = vld [vmem:[#allocation7] sm:$0xff]
        %v370 = vld [vmem:[#allocation7 + $0x8] sm:$0xff]
        %v371 = vld [vmem:[#allocation7 + $0x10] sm:$0xff]
        %v372 = vld [vmem:[#allocation7 + $0x18] sm:$0xff]
        %v373 = vld [vmem:[#allocation7 + $0x20] sm:$0xff]
        %v374 = vld [vmem:[#allocation7 + $0x28] sm:$0xff]
        %v375 = vld [vmem:[#allocation7 + $0x30] sm:$0xff]
        %v376 = vld [vmem:[#allocation7 + $0x38] sm:$0xff]
        %v377 = vld [vmem:[#allocation7 + $0x40] sm:$0xff]
        %v378 = vld [vmem:[#allocation7 + $0x48] sm:$0xff]
        %v379 = vld [vmem:[#allocation7 + $0x50] sm:$0xff]
        %v380 = vld [vmem:[#allocation7 + $0x58] sm:$0xff]
        %v381 = vld [vmem:[#allocation7 + $0x60] sm:$0xff]
        %v382 = vld [vmem:[#allocation7 + $0x68] sm:$0xff]
        %v383 = vld [vmem:[#allocation7 + $0x70] sm:$0xff]
        %v384 = vld [vmem:[#allocation7 + $0x78] sm:$0xff]
        %v385 = vld [vmem:[%s4] sm:$0x1]
        %v387 = vperm.slane %v385, 0
        %389 = vmatpush.msra.mxu0 %v384
        %390 = vmatpush.msra.mxu0 %v383
        %391 = vmatpush.msra.mxu0 %v382
        %392 = vmatpush.msra.mxu0 %v381
        %393 = vmatpush.msra.mxu0 %v380
        %394 = vmatpush.msra.mxu0 %v379
        %395 = vmatpush.msra.mxu0 %v378
        %396 = vmatpush.msra.mxu0 %v377
        %397 = vmatpush.msra.mxu0 %v376
        %398 = vmatpush.msra.mxu0 %v375
        %399 = vmatpush.msra.mxu0 %v374
        %400 = vmatpush.msra.mxu0 %v373
        %401 = vmatpush.msra.mxu0 %v372
        %402 = vmatpush.msra.mxu0 %v371
        %403 = vmatpush.msra.mxu0 %v370
        %404 = vmatpush.msra.mxu0 %v369
        %405 = vmatmul.f32.gmra.mxu0 %v367
        %v406 = vpop.f32.mrf.mxu0
        %v407 = vadd.f32 %v387, %v406
        %408 = vmatmul.f32.gmra.mxu0 %v368
        %v409 = vpop.f32.mrf.mxu0
        %v410 = vadd.f32 %v387, %v409
        %411 = vdwg.mxu0
        %v412 = vmul.f32 %v407, %v407
        %v413 = vmul.f32 %v410, %v410
        %414 = vadd.xlane.f32.xlu0 %v412
        %v415 = vpop.xlane.xlu0 %414
        %416 = vadd.xlane.f32.xlu0 %v413
        %v417 = vpop.xlane.xlu0 %416
        %v418 = vmax.f32 %v415, 1e-24
        %v419 = vmax.f32 %v417, 1e-24
        %v420 = vrsqrt.pop %v418
        %v421 = vmul.f32 %v420, %v418
        %v422 = vmul.f32 %v421, %v420
        %v423 = vmul.f32 0.5, %v422
        %v424 = vsub.f32 1.5, %v423
        %v425 = vmul.f32 %v420, %v424
        %vm426 = vweird.f32 %v418
        %vm427 = vweird.f32 %v420
        %vm428 = vmor %vm426, %vm427
        %v429 = vsel %vm428, %v420, %v425
        %v430 = vrsqrt.pop %v419
        %v431 = vmul.f32 %v430, %v419
        %v432 = vmul.f32 %v431, %v430
        %v433 = vmul.f32 0.5, %v432
        %v434 = vsub.f32 1.5, %v433
        %v435 = vmul.f32 %v430, %v434
        %vm436 = vweird.f32 %v419
        %vm437 = vweird.f32 %v430
        %vm438 = vmor %vm436, %vm437
        %v439 = vsel %vm438, %v430, %v435
        %v440 = vmul.f32 %v407, %v429
        %v441 = vmul.f32 %v410, %v439
        %442 = vst [vmem:[%s278] sm:$0xff] %v440
        %443 = vst [vmem:[%s278 + $0x8] sm:$0xff] %v441
        %s444 = sand.u32 %s141, 1
        %s445 = scalar_lea.sflag [#allocation4], %s444
        %s446 = sand.u32 %s141, 1
        %s447 = smul.addr %s446, 16
        %s448 = scalar_lea.vmem [#allocation8], %s447
        // Predicated region
        $region53: #{tpu_custom_call.1} parent=39 // pred_check
          %p449 = pneg %p151
        $region54: #{tpu_custom_call.1} parent=39 // pred_check_branch
          %451 = sbr.rel (%p449) target = $region56
        $region55: #{tpu_custom_call.1} parent=39 // pred_region
          %s452 = smul.u32 2, %s23
          %454 = vsyncadd %s445, 0
          %s455 = smul.addr %s452, 8
          %s456 = scalar_lea.hbm %s5, %s455
          %s457 = sshll.u32 %s448, 4
          %s458 = int_to_ptr.vmem [resolvable:$true] %s457
          %s459 = sshll.u32 %s456, 4
          %s460 = int_to_ptr.hbm [resolvable:$true] %s459
          %465 = dma.vmem_to_hbm [thread:$0]  %s458, 256, %s460, %s445, 128, 128, 8
        $region56: #{tpu_custom_call.1} parent=39 // pred_fallthru
          _
      $region40: #{tpu_custom_call.1} parent=5 // pred_fallthru
        _
      %p466 = scmp.le.s32.totalorder 2, %s18
      // Predicated region
      $region57: #{tpu_custom_call.1} parent=5 // pred_check
        %p467 = pneg %p466
      $region58: #{tpu_custom_call.1} parent=5 // pred_check_branch
        %469 = sbr.rel (%p467) target = $region60
      $region59: #{tpu_custom_call.1} parent=5 // pred_region
        %s470 = ssub.s32 %s18, 2
        // Predicated region
        $region61: #{tpu_custom_call.1} parent=59 // pred_check
          %p471 = pneg %p157
        $region62: #{tpu_custom_call.1} parent=59 // pred_check_branch
          %473 = sbr.rel (%p471) target = $region64
        $region63: #{tpu_custom_call.1} parent=59 // pred_region
          %s474 = sand.u32 %s142, 1
          %s475 = scalar_lea.sflag [#allocation4], %s474
          %s476 = sand.u32 %s142, 1
          %s477 = smul.addr %s476, 16
          %s478 = scalar_lea.vmem [#allocation8], %s477
          %480 = dma.done %s475, 256
        $region64: #{tpu_custom_call.1} parent=59 // pred_fallthru
          _
      $region60: #{tpu_custom_call.1} parent=5 // pred_fallthru
        _
    $region6: #{tpu_custom_call.1} parent=1 // loop_footer
      %s22 = sadd.s32 1, %s18
    $region7: #{tpu_custom_call.1} parent=1 // loop_footer_branch
      %17 = sbr.rel target = $region3
    $region8: #{tpu_custom_call.1} parent=1 // loop_exit
      _
    %481 = vsyncpa [#allocation3], 1
    %s482 = scalar_lea.sflag [#allocation3], 1
    %483 = vsyncpa %s482, 1
    %484 = vsyncpa [#allocation6], 1
    %485 = vsyncpa [#allocation4], 1
    %s486 = scalar_lea.sflag [#allocation4], 1
    %487 = vsyncpa %s486, 1

</llo_original>
